<compile_context>
chip_gen: v7x
topology: tpu7x:2x2x1
jax: 0.10.0
libtpu: 0.0.40
codegen_flags: <defaults>
</compile_context>

<pallas_src>
import functools

import jax
import jax.numpy as jnp
from jax.experimental import pallas as pl
from jax.experimental.pallas import tpu as pltpu


def _round_up(n, m):
    return ((n + m - 1) // m) * m


def decoder_kernel(x_ref, w1_ref, b1_ref, w2_ref, b2_ref, w3_ref, b3_ref, o_ref):
    # fc1 + ReLU: bf16 MXU inputs, f32 accumulation, f32 bias/activation math.
    h = jnp.dot(x_ref[...], w1_ref[...], preferred_element_type=jnp.float32)
    h = jnp.maximum(h + b1_ref[...], 0.0)
    # fc2 + ReLU
    h = jnp.dot(h.astype(jnp.bfloat16), w2_ref[...],
                preferred_element_type=jnp.float32)
    h = jnp.maximum(h + b2_ref[...], 0.0)
    # fc3 (no activation)
    h = jnp.dot(h.astype(jnp.bfloat16), w3_ref[...],
                preferred_element_type=jnp.float32)
    o_ref[...] = (h + b3_ref[...]).astype(o_ref.dtype)


@functools.partial(jax.jit, static_argnames=("out_dim", "block_b"))
def decoder_forward(x, padded_params, *, out_dim, block_b=256):
    """x: (B, embedding_dim) f32. padded_params: lane-padded bf16 W / f32 b."""
    w1, b1, w2, b2, w3, b3 = padded_params
    B, d_in = x.shape
    d_out_pad = w3.shape[1]

    # Batch tile: multiple of 8 sublanes, capped at block_b (256 rows matches
    # the v6e/v7x MXU M dimension and amortizes per-grid-step overhead).
    tb = min(block_b, _round_up(B, 8))
    b_pad = _round_up(B, tb)
    if b_pad != B:
        x = jnp.pad(x, ((0, b_pad - B), (0, 0)))
    x = x.astype(jnp.bfloat16)

    # Weights/biases: constant block index -> fetched once, VMEM-resident.
    const_spec = lambda a: pl.BlockSpec(a.shape, lambda i: (0,) * a.ndim)

    out = pl.pallas_call(
        decoder_kernel,
        out_shape=jax.ShapeDtypeStruct((b_pad, d_out_pad), jnp.float32),
        grid_spec=pl.GridSpec(
            grid=(b_pad // tb,),
            in_specs=[
                pl.BlockSpec((tb, d_in), lambda i: (i, 0)),
                const_spec(w1), const_spec(b1),
                const_spec(w2), const_spec(b2),
                const_spec(w3), const_spec(b3),
            ],
            out_specs=pl.BlockSpec((tb, d_out_pad), lambda i: (i, 0)),
        ),
        compiler_params=pltpu.CompilerParams(
            dimension_semantics=("parallel",)),  # v7x: shard batch over 2 TCs
    )(x, w1, b1, w2, b2, w3, b3)
    return out[:B, :out_dim]


def init_params(key, embedding_dim, output_dim, dtype=jnp.float32):
    """PyTorch nn.Linear default init: U(-1/sqrt(fan_in), 1/sqrt(fan_in)).

    Returns (raw_f32_params, padded_params). Padded params zero-pad every
    hidden/output feature dim up to a multiple of 128 (exact through
    matmul+ReLU) and cast weights to bf16 for the MXU; biases stay f32.
    """
    dims = [(embedding_dim, 100), (100, 500), (500, output_dim)]
    raw, padded = [], []
    for idx, (fan_in, fan_out) in enumerate(dims):
        key, kw, kb = jax.random.split(key, 3)
        bound = 1.0 / (fan_in ** 0.5)
        w = jax.random.uniform(kw, (fan_in, fan_out), dtype, -bound, bound)
        b = jax.random.uniform(kb, (1, fan_out), dtype, -bound, bound)
        raw += [w, b]
        # First layer's fan_in must match x's (unpadded) feature dim; later
        # layers' fan_in matches the previous layer's padded fan_out.
        fi_p = fan_in if idx == 0 else _round_up(fan_in, 128)
        fo_p = _round_up(fan_out, 128)
        w_p = jnp.pad(w, ((0, fi_p - fan_in), (0, fo_p - fan_out)))
        b_p = jnp.pad(b, ((0, 0), (0, fo_p - fan_out)))
        padded += [w_p.astype(jnp.bfloat16), b_p.astype(jnp.float32)]
    return tuple(raw), tuple(padded)


def reference_forward(x, raw_params):
    w1, b1, w2, b2, w3, b3 = raw_params
    h = jnp.maximum(x @ w1 + b1, 0.0)
    h = jnp.maximum(h @ w2 + b2, 0.0)
    return h @ w3 + b3


if __name__ == "__main__":
    key = jax.random.PRNGKey(0)
    batch, embedding_dim, output_dim = 8, 32, 64

    kx, kp = jax.random.split(key)
    x = jax.random.normal(kx, (batch, embedding_dim), jnp.float32)
    raw_params, padded_params = init_params(kp, embedding_dim, output_dim)

    out = decoder_forward(x, padded_params, out_dim=output_dim)
    out = jax.block_until_ready(out)

    ref = reference_forward(x, raw_params)
    assert out.shape == (batch, output_dim)
    max_err = float(jnp.max(jnp.abs(out - ref)))
    # bf16 MXU inputs with f32 accumulation -> loosened tolerance vs f32 ref.
    assert jnp.allclose(out, ref, atol=2e-2, rtol=2e-2), \
        f"mismatch vs reference (max abs err {max_err})"
    print("KERNEL_OK")
</pallas_src>

<mosaic_0001>
module attributes {stable_mosaic.version = 11 : i64} {
  func.func @decoder_kernel(%arg0: i32, %arg1: memref<8x32xbf16, #tpu.memory_space<vmem>>, %arg2: memref<32x128xbf16, #tpu.memory_space<vmem>>, %arg3: memref<1x128xf32, #tpu.memory_space<vmem>>, %arg4: memref<128x512xbf16, #tpu.memory_space<vmem>>, %arg5: memref<1x512xf32, #tpu.memory_space<vmem>>, %arg6: memref<512x128xbf16, #tpu.memory_space<vmem>>, %arg7: memref<1x128xf32, #tpu.memory_space<vmem>>, %arg8: memref<8x128xf32, #tpu.memory_space<vmem>>) attributes {dimension_semantics = [#tpu.dimension_semantics<parallel>], iteration_bounds = array<i64: 1>, scalar_prefetch = 0 : i64, scratch_operands = 0 : i64, tpu.core_type = #tpu.core_type<tc>, window_params = [{transform_indices = @transform_0, window_bounds = array<i64: 8, 32>}, {pipeline_mode = #tpu.pipeline_mode<synchronous>, transform_indices = @transform_1, window_bounds = array<i64: 32, 128>}, {pipeline_mode = #tpu.pipeline_mode<synchronous>, transform_indices = @transform_2, window_bounds = array<i64: 1, 128>}, {pipeline_mode = #tpu.pipeline_mode<synchronous>, transform_indices = @transform_3, window_bounds = array<i64: 128, 512>}, {pipeline_mode = #tpu.pipeline_mode<synchronous>, transform_indices = @transform_4, window_bounds = array<i64: 1, 512>}, {pipeline_mode = #tpu.pipeline_mode<synchronous>, transform_indices = @transform_5, window_bounds = array<i64: 512, 128>}, {pipeline_mode = #tpu.pipeline_mode<synchronous>, transform_indices = @transform_6, window_bounds = array<i64: 1, 128>}, {transform_indices = @transform_7, window_bounds = array<i64: 8, 128>}]} {
    %c0 = arith.constant 0 : index
    %c0_0 = arith.constant 0 : index
    %0 = vector.load %arg1[%c0, %c0_0] : memref<8x32xbf16, #tpu.memory_space<vmem>>, vector<8x32xbf16>
    %c0_1 = arith.constant 0 : index
    %c0_2 = arith.constant 0 : index
    %1 = vector.load %arg2[%c0_1, %c0_2] : memref<32x128xbf16, #tpu.memory_space<vmem>>, vector<32x128xbf16>
    %cst = arith.constant dense<0.000000e+00> : vector<8x128xf32>
    %2 = tpu.matmul %0, %1, %cst {dimension_numbers = #tpu.dot_dimension_numbers<[1], [0], [0], [1], [0, 0, 1, 1], [], []>} : vector<8x32xbf16>, vector<32x128xbf16>, vector<8x128xf32> -> vector<8x128xf32>
    %c0_3 = arith.constant 0 : index
    %c0_4 = arith.constant 0 : index
    %3 = vector.load %arg3[%c0_3, %c0_4] : memref<1x128xf32, #tpu.memory_space<vmem>>, vector<1x128xf32>
    %4 = vector.broadcast %3 : vector<1x128xf32> to vector<8x128xf32>
    %5 = arith.addf %2, %4 : vector<8x128xf32>
    %cst_5 = arith.constant 0.000000e+00 : f32
    %6 = vector.broadcast %cst_5 : f32 to vector<8x128xf32>
    %7 = arith.maximumf %5, %6 : vector<8x128xf32>
    %8 = arith.truncf %7 : vector<8x128xf32> to vector<8x128xbf16>
    %c0_6 = arith.constant 0 : index
    %c0_7 = arith.constant 0 : index
    %9 = vector.load %arg4[%c0_6, %c0_7] : memref<128x512xbf16, #tpu.memory_space<vmem>>, vector<128x512xbf16>
    %cst_8 = arith.constant dense<0.000000e+00> : vector<8x512xf32>
    %10 = tpu.matmul %8, %9, %cst_8 {dimension_numbers = #tpu.dot_dimension_numbers<[1], [0], [0], [1], [0, 0, 1, 1], [], []>} : vector<8x128xbf16>, vector<128x512xbf16>, vector<8x512xf32> -> vector<8x512xf32>
    %c0_9 = arith.constant 0 : index
    %c0_10 = arith.constant 0 : index
    %11 = vector.load %arg5[%c0_9, %c0_10] : memref<1x512xf32, #tpu.memory_space<vmem>>, vector<1x512xf32>
    %12 = vector.broadcast %11 : vector<1x512xf32> to vector<8x512xf32>
    %13 = arith.addf %10, %12 : vector<8x512xf32>
    %cst_11 = arith.constant 0.000000e+00 : f32
    %14 = vector.broadcast %cst_11 : f32 to vector<8x512xf32>
    %15 = arith.maximumf %13, %14 : vector<8x512xf32>
    %16 = arith.truncf %15 : vector<8x512xf32> to vector<8x512xbf16>
    %c0_12 = arith.constant 0 : index
    %c0_13 = arith.constant 0 : index
    %17 = vector.load %arg6[%c0_12, %c0_13] : memref<512x128xbf16, #tpu.memory_space<vmem>>, vector<512x128xbf16>
    %cst_14 = arith.constant dense<0.000000e+00> : vector<8x128xf32>
    %18 = tpu.matmul %16, %17, %cst_14 {dimension_numbers = #tpu.dot_dimension_numbers<[1], [0], [0], [1], [0, 0, 1, 1], [], []>} : vector<8x512xbf16>, vector<512x128xbf16>, vector<8x128xf32> -> vector<8x128xf32>
    %c0_15 = arith.constant 0 : index
    %c0_16 = arith.constant 0 : index
    %19 = vector.load %arg7[%c0_15, %c0_16] : memref<1x128xf32, #tpu.memory_space<vmem>>, vector<1x128xf32>
    %20 = vector.broadcast %19 : vector<1x128xf32> to vector<8x128xf32>
    %21 = arith.addf %18, %20 : vector<8x128xf32>
    %c0_17 = arith.constant 0 : index
    %c0_18 = arith.constant 0 : index
    %22 = vector.load %arg8[%c0_17, %c0_18] : memref<8x128xf32, #tpu.memory_space<vmem>>, vector<8x128xf32>
    tpu.vector_store %arg8[%c0_17, %c0_18], %21 {strides = array<i32>} : memref<8x128xf32, #tpu.memory_space<vmem>>, vector<8x128xf32>,
    return
  }
  func.func @transform_0(%arg0: i32) -> (i32, i32) {
    %c0_i32 = arith.constant 0 : i32
    %c0_i32_0 = arith.constant 0 : i32
    return %arg0, %c0_i32 : i32, i32
  }
  func.func @transform_1(%arg0: i32) -> (i32, i32) {
    %c0_i32 = arith.constant 0 : i32
    %c0_i32_0 = arith.constant 0 : i32
    %c0_i32_1 = arith.constant 0 : i32
    return %c0_i32, %c0_i32_0 : i32, i32
  }
  func.func @transform_2(%arg0: i32) -> (i32, i32) {
    %c0_i32 = arith.constant 0 : i32
    %c0_i32_0 = arith.constant 0 : i32
    %c0_i32_1 = arith.constant 0 : i32
    return %c0_i32, %c0_i32_0 : i32, i32
  }
  func.func @transform_3(%arg0: i32) -> (i32, i32) {
    %c0_i32 = arith.constant 0 : i32
    %c0_i32_0 = arith.constant 0 : i32
    %c0_i32_1 = arith.constant 0 : i32
    return %c0_i32, %c0_i32_0 : i32, i32
  }
  func.func @transform_4(%arg0: i32) -> (i32, i32) {
    %c0_i32 = arith.constant 0 : i32
    %c0_i32_0 = arith.constant 0 : i32
    %c0_i32_1 = arith.constant 0 : i32
    return %c0_i32, %c0_i32_0 : i32, i32
  }
  func.func @transform_5(%arg0: i32) -> (i32, i32) {
    %c0_i32 = arith.constant 0 : i32
    %c0_i32_0 = arith.constant 0 : i32
    %c0_i32_1 = arith.constant 0 : i32
    return %c0_i32, %c0_i32_0 : i32, i32
  }
  func.func @transform_6(%arg0: i32) -> (i32, i32) {
    %c0_i32 = arith.constant 0 : i32
    %c0_i32_0 = arith.constant 0 : i32
    %c0_i32_1 = arith.constant 0 : i32
    return %c0_i32, %c0_i32_0 : i32, i32
  }
  func.func @transform_7(%arg0: i32) -> (i32, i32) {
    %c0_i32 = arith.constant 0 : i32
    %c0_i32_0 = arith.constant 0 : i32
    return %arg0, %c0_i32 : i32, i32
  }
}

</mosaic_0001>

<llo_original>
// kernel: decoder_forward.1
$region0: #{decoder_forward.1}
  #allocation0 [shape = 'u32[]', space=smem, size = 0x4, offset = 0x4, fixed_abs, tag = 'smem constant byte address 0x4 - core index']
  #allocation1 [shape = 'u32[144,128]{1,0:T(1,128)}', space=vmem, size = 0x12000, scoped, tag = 'internal scratch']
  %s0 = inlined_call_operand.vmem [shape: bf16[8,32], index: 0, kind: input, shape index: {}]
  %s1 = inlined_call_operand.hbm [shape: bf16[32,128], index: 1, kind: input, shape index: {}]
  %s2 = inlined_call_operand.vmem [shape: f32[1,128], index: 2, kind: input, shape index: {}]
  %s3 = inlined_call_operand.hbm [shape: bf16[128,512], index: 3, kind: input, shape index: {}]
  %s4 = inlined_call_operand.vmem [shape: f32[1,512], index: 4, kind: input, shape index: {}]
  %s5 = inlined_call_operand.hbm [shape: bf16[512,128], index: 5, kind: input, shape index: {}]
  %s6 = inlined_call_operand.vmem [shape: f32[1,128], index: 6, kind: input, shape index: {}]
  %s7 = inlined_call_operand.hbm [shape: f32[8,128], index: 7, kind: output, shape index: {}]
  %s8 = sld [smem:[#allocation0]]
  $region50: #{decoder_forward.1} parent=0
    _
  %s10 = ssub.s32 1, %s8
  %s11 = scalar_select 0, %s10, %s8
  $region1: #{decoder_forward.1} parent=0
    #allocation2 [shape = 'u8[8192]{0}', space=vmem, size = 0x2000, scoped, tag = 'input window, operand 1, single buffered']
    #allocation3 [shape = 's32[1]{0}', space=sflag, size = 0x4, scoped, tag = 'scoped memory for decoder_forward.1']
    #allocation4 [shape = 's32[1]{0}', space=sflag, size = 0x4, scoped, tag = 'scoped memory for decoder_forward.1']
    #allocation5 [shape = 'u8[131072]{0}', space=vmem, size = 0x20000, scoped, tag = 'input window, operand 3, single buffered']
    #allocation6 [shape = 's32[1]{0}', space=sflag, size = 0x4, scoped, tag = 'scoped memory for decoder_forward.1']
    #allocation7 [shape = 'u8[131072]{0}', space=vmem, size = 0x20000, scoped, tag = 'input window, operand 5, single buffered']
    #allocation8 [shape = 'u8[4096]{0}', space=vmem, size = 0x1000, scoped, tag = 'output window, operand 0, single buffered']
    %12 = vsyncpa [#allocation3], 0
    %13 = vsyncpa [#allocation6], 0
    %14 = vsyncpa [#allocation4], 0
    // Predicated region
    $region2: #{decoder_forward.1} parent=1 // pred_check
      _
    $region3: #{decoder_forward.1} parent=1 // pred_check_branch
      %16 = sbr.rel (0) target = $region5
    $region4: #{decoder_forward.1} parent=1 // pred_region
      _
    $region5: #{decoder_forward.1} parent=1 // pred_fallthru
      _
    // Predicated region
    $region6: #{decoder_forward.1} parent=1 // pred_check
      _
    $region7: #{decoder_forward.1} parent=1 // pred_check_branch
      %18 = sbr.rel (0) target = $region9
    $region8: #{decoder_forward.1} parent=1 // pred_region
      %s20 = ssub.s32 256, 256
      %21 = vsyncadd [#allocation3], %s20
      %s22 = sshll.u32 [#allocation2], 4
      %s23 = int_to_ptr.vmem [resolvable:$true] %s22
      %28 = dma.hbm_to_vmem [thread:$0]  %s1, 256, %s23, [#allocation3], 64, 64, 4
    $region9: #{decoder_forward.1} parent=1 // pred_fallthru
      _
    // Predicated region
    $region10: #{decoder_forward.1} parent=1 // pred_check
      _
    $region11: #{decoder_forward.1} parent=1 // pred_check_branch
      %30 = sbr.rel (0) target = $region13
    $region12: #{decoder_forward.1} parent=1 // pred_region
      _
    $region13: #{decoder_forward.1} parent=1 // pred_fallthru
      _
    // Predicated region
    $region14: #{decoder_forward.1} parent=1 // pred_check
      _
    $region15: #{decoder_forward.1} parent=1 // pred_check_branch
      %32 = sbr.rel (0) target = $region17
    $region16: #{decoder_forward.1} parent=1 // pred_region
      %s34 = ssub.s32 4096, 4096
      %35 = vsyncadd [#allocation6], %s34
      %s36 = sshll.u32 [#allocation5], 4
      %s37 = int_to_ptr.vmem [resolvable:$true] %s36
      %42 = dma.hbm_to_vmem [thread:$0]  %s3, 4096, %s37, [#allocation6], 256, 256, 16
    $region17: #{decoder_forward.1} parent=1 // pred_fallthru
      _
    // Predicated region
    $region18: #{decoder_forward.1} parent=1 // pred_check
      _
    $region19: #{decoder_forward.1} parent=1 // pred_check_branch
      %44 = sbr.rel (0) target = $region21
    $region20: #{decoder_forward.1} parent=1 // pred_region
      _
    $region21: #{decoder_forward.1} parent=1 // pred_fallthru
      _
    // Predicated region
    $region22: #{decoder_forward.1} parent=1 // pred_check
      _
    $region23: #{decoder_forward.1} parent=1 // pred_check_branch
      %46 = sbr.rel (0) target = $region25
    $region24: #{decoder_forward.1} parent=1 // pred_region
      %s48 = ssub.s32 4096, 4096
      %49 = vsyncadd [#allocation6], %s48
      %s50 = sshll.u32 [#allocation7], 4
      %s51 = int_to_ptr.vmem [resolvable:$true] %s50
      %56 = dma.hbm_to_vmem [thread:$0]  %s5, 4096, %s51, [#allocation6], 64, 64, 4
    $region25: #{decoder_forward.1} parent=1 // pred_fallthru
      _
    // Predicated region
    $region26: #{decoder_forward.1} parent=1 // pred_check
      _
    $region27: #{decoder_forward.1} parent=1 // pred_check_branch
      %58 = sbr.rel (0) target = $region29
    $region28: #{decoder_forward.1} parent=1 // pred_region
      _
    $region29: #{decoder_forward.1} parent=1 // pred_fallthru
      _
    // Predicated region
    $region30: #{decoder_forward.1} parent=1 // pred_check
      _
    $region31: #{decoder_forward.1} parent=1 // pred_check_branch
      %60 = sbr.rel (0) target = $region33
    $region32: #{decoder_forward.1} parent=1 // pred_region
      %61 = dma.done [#allocation3], 256
    $region33: #{decoder_forward.1} parent=1 // pred_fallthru
      _
    // Predicated region
    $region34: #{decoder_forward.1} parent=1 // pred_check
      _
    $region35: #{decoder_forward.1} parent=1 // pred_check_branch
      %63 = sbr.rel (0) target = $region37
    $region36: #{decoder_forward.1} parent=1 // pred_region
      %64 = dma.done [#allocation6], 4096
    $region37: #{decoder_forward.1} parent=1 // pred_fallthru
      _
    // Predicated region
    $region38: #{decoder_forward.1} parent=1 // pred_check
      _
    $region39: #{decoder_forward.1} parent=1 // pred_check_branch
      %66 = sbr.rel (0) target = $region41
    $region40: #{decoder_forward.1} parent=1 // pred_region
      %67 = dma.done [#allocation6], 4096
    $region41: #{decoder_forward.1} parent=1 // pred_fallthru
      _
    %v69 = vld [vmem:[%s0] sm:$0xf]
    %v70 = vld [vmem:[#allocation2] sm:$0xf]
    %v71 = vld [vmem:[#allocation2 + $0x4] sm:$0xf]
    %v72 = vld [vmem:[#allocation2 + $0x8] sm:$0xf]
    %v73 = vld [vmem:[#allocation2 + $0xc] sm:$0xf]
    %v74 = vld [vmem:[%s2] sm:$0x1]
    %v76 = vlaneseq
    %v77 = vshrl.u32 %v76, 7
    %v78 = vsub.s32 0, %v77
    %v79 = vrot.slane %v74, %v78
    %v85 = vunpack.c.l.b16 %v70
    %v86 = vunpack.c.l.b16 %v71
    %v87 = vunpack.c.l.b16 %v72
    %v88 = vunpack.c.l.b16 %v73
    %v89 = vpack.c.b16 %v86, %v85
    %v90 = vpack.c.b16 %v88, %v87
    %vm93 = vcmask 261120
    %v95 = vsel %vm93, %v69, 0
    %97 = vmatprep.subr.bf16.mxu0 0
    %98 = vmatpush1.bf16.msra.mxu0 %v89
    %99 = vmatprep.subr.bf16.mxu0 0
    %100 = vmatpush1.bf16.msra.mxu0 %v90
    %101 = vmatprep.subr.bf16.mxu0 0
    %102 = vmatpush1.bf16.msra.mxu0 0
    %103 = vmatprep.subr.bf16.mxu0 0
    %104 = vmatpush1.bf16.msra.mxu0 0
    %105 = vmatprep.subr.bf16.mxu0 0
    %106 = vmatpush1.bf16.msra.mxu0 0
    %107 = vmatprep.subr.bf16.mxu0 0
    %108 = vmatpush1.bf16.msra.mxu0 0
    %109 = vmatprep.subr.bf16.mxu0 0
    %110 = vmatpush1.bf16.msra.mxu0 0
    %111 = vmatprep.subr.bf16.mxu0 0
    %112 = vmatpush1.bf16.msra.mxu0 0
    %113 = vmatprep.subr.bf16.mxu0 0
    %114 = vmatpush1.bf16.msra.mxu0 0
    %115 = vmatprep.subr.bf16.mxu0 0
    %116 = vmatpush1.bf16.msra.mxu0 0
    %117 = vmatprep.subr.bf16.mxu0 0
    %118 = vmatpush1.bf16.msra.mxu0 0
    %119 = vmatprep.subr.bf16.mxu0 0
    %120 = vmatpush1.bf16.msra.mxu0 0
    %121 = vmatprep.subr.bf16.mxu0 0
    %122 = vmatpush1.bf16.msra.mxu0 0
    %123 = vmatprep.subr.bf16.mxu0 0
    %124 = vmatpush1.bf16.msra.mxu0 0
    %125 = vmatprep.subr.bf16.mxu0 0
    %126 = vmatpush1.bf16.msra.mxu0 0
    %127 = vmatprep.subr.bf16.mxu0 0
    %128 = vmatpush1.bf16.msra.mxu0 0
    %129 = vmatprep.mubr.bf16.mxu0 0
    %130 = vmatmul.mubr.bf16.gmra.mrb[0].mxu0 %v95
    %v131 = vpop.f32.mrb[0].mxu0
    %v132 = vadd.f32 %v79, %v131
    %v133 = vpop.f32.mrb[0].mxu0
    %v134 = vpop.f32.mrb[0].mxu0
    %v135 = vpop.f32.mrb[0].mxu0
    %136 = vdwg.mxu0
    %v137 = vmax.f32 %v132, 0.0
    %v138 = vpack.c.bf16 %v137, %v137
    %v139 = vld [vmem:[#allocation5] sm:$0xff]
    %v140 = vld [vmem:[#allocation5 + $0x8] sm:$0xff]
    %v141 = vld [vmem:[#allocation5 + $0x10] sm:$0xff]
    %v142 = vld [vmem:[#allocation5 + $0x18] sm:$0xff]
    %v143 = vld [vmem:[#allocation5 + $0x20] sm:$0xff]
    %v144 = vld [vmem:[#allocation5 + $0x28] sm:$0xff]
    %v145 = vld [vmem:[#allocation5 + $0x30] sm:$0xff]
    %v146 = vld [vmem:[#allocation5 + $0x38] sm:$0xff]
    %v147 = vld [vmem:[#allocation5 + $0x40] sm:$0xff]
    %v148 = vld [vmem:[#allocation5 + $0x48] sm:$0xff]
    %v149 = vld [vmem:[#allocation5 + $0x50] sm:$0xff]
    %v150 = vld [vmem:[#allocation5 + $0x58] sm:$0xff]
    %v151 = vld [vmem:[#allocation5 + $0x60] sm:$0xff]
    %v152 = vld [vmem:[#allocation5 + $0x68] sm:$0xff]
    %v153 = vld [vmem:[#allocation5 + $0x70] sm:$0xff]
    %v154 = vld [vmem:[#allocation5 + $0x78] sm:$0xff]
    %v155 = vld [vmem:[#allocation5 + $0x80] sm:$0xff]
    %v156 = vld [vmem:[#allocation5 + $0x88] sm:$0xff]
    %v157 = vld [vmem:[#allocation5 + $0x90] sm:$0xff]
    %v158 = vld [vmem:[#allocation5 + $0x98] sm:$0xff]
    %v159 = vld [vmem:[#allocation5 + $0xa0] sm:$0xff]
    %v160 = vld [vmem:[#allocation5 + $0xa8] sm:$0xff]
    %v161 = vld [vmem:[#allocation5 + $0xb0] sm:$0xff]
    %v162 = vld [vmem:[#allocation5 + $0xb8] sm:$0xff]
    %v163 = vld [vmem:[#allocation5 + $0xc0] sm:$0xff]
    %v164 = vld [vmem:[#allocation5 + $0xc8] sm:$0xff]
    %v165 = vld [vmem:[#allocation5 + $0xd0] sm:$0xff]
    %v166 = vld [vmem:[#allocation5 + $0xd8] sm:$0xff]
    %v167 = vld [vmem:[#allocation5 + $0xe0] sm:$0xff]
    %v168 = vld [vmem:[#allocation5 + $0xe8] sm:$0xff]
    %v169 = vld [vmem:[#allocation5 + $0xf0] sm:$0xff]
    %v170 = vld [vmem:[#allocation5 + $0xf8] sm:$0xff]
    %v171 = vld [vmem:[%s4] sm:$0xf]
    %v173 = vlaneseq
    %v174 = vshrl.u32 %v173, 7
    %v175 = vsub.s32 0, %v174
    %v176 = vrot.slane %v171, %v175
    %v177 = vlaneseq
    %v178 = vshrl.u32 %v177, 7
    %v179 = vsub.s32 1, %v178
    %v180 = vrot.slane %v171, %v179
    %v181 = vlaneseq
    %v182 = vshrl.u32 %v181, 7
    %v183 = vsub.s32 2, %v182
    %v184 = vrot.slane %v171, %v183
    %v185 = vlaneseq
    %v186 = vshrl.u32 %v185, 7
    %v187 = vsub.s32 3, %v186
    %v188 = vrot.slane %v171, %v187
    %v225 = vunpack.c.l.b16 %v139
    %v226 = vunpack.c.h.b16 %v139
    %v227 = vunpack.c.l.b16 %v140
    %v228 = vunpack.c.h.b16 %v140
    %v229 = vunpack.c.l.b16 %v141
    %v230 = vunpack.c.h.b16 %v141
    %v231 = vunpack.c.l.b16 %v142
    %v232 = vunpack.c.h.b16 %v142
    %v233 = vunpack.c.l.b16 %v143
    %v234 = vunpack.c.h.b16 %v143
    %v235 = vunpack.c.l.b16 %v144
    %v236 = vunpack.c.h.b16 %v144
    %v237 = vunpack.c.l.b16 %v145
    %v238 = vunpack.c.h.b16 %v145
    %v239 = vunpack.c.l.b16 %v146
    %v240 = vunpack.c.h.b16 %v146
    %v241 = vunpack.c.l.b16 %v147
    %v242 = vunpack.c.h.b16 %v147
    %v243 = vunpack.c.l.b16 %v148
    %v244 = vunpack.c.h.b16 %v148
    %v245 = vunpack.c.l.b16 %v149
    %v246 = vunpack.c.h.b16 %v149
    %v247 = vunpack.c.l.b16 %v150
    %v248 = vunpack.c.h.b16 %v150
    %v249 = vunpack.c.l.b16 %v151
    %v250 = vunpack.c.h.b16 %v151
    %v251 = vunpack.c.l.b16 %v152
    %v252 = vunpack.c.h.b16 %v152
    %v253 = vunpack.c.l.b16 %v153
    %v254 = vunpack.c.h.b16 %v153
    %v255 = vunpack.c.l.b16 %v154
    %v256 = vunpack.c.h.b16 %v154
    %v257 = vunpack.c.l.b16 %v155
    %v258 = vunpack.c.h.b16 %v155
    %v259 = vunpack.c.l.b16 %v156
    %v260 = vunpack.c.h.b16 %v156
    %v261 = vunpack.c.l.b16 %v157
    %v262 = vunpack.c.h.b16 %v157
    %v263 = vunpack.c.l.b16 %v158
    %v264 = vunpack.c.h.b16 %v158
    %v265 = vunpack.c.l.b16 %v159
    %v266 = vunpack.c.h.b16 %v159
    %v267 = vunpack.c.l.b16 %v160
    %v268 = vunpack.c.h.b16 %v160
    %v269 = vunpack.c.l.b16 %v161
    %v270 = vunpack.c.h.b16 %v161
    %v271 = vunpack.c.l.b16 %v162
    %v272 = vunpack.c.h.b16 %v162
    %v273 = vunpack.c.l.b16 %v163
    %v274 = vunpack.c.h.b16 %v163
    %v275 = vunpack.c.l.b16 %v164
    %v276 = vunpack.c.h.b16 %v164
    %v277 = vunpack.c.l.b16 %v165
    %v278 = vunpack.c.h.b16 %v165
    %v279 = vunpack.c.l.b16 %v166
    %v280 = vunpack.c.h.b16 %v166
    %v281 = vunpack.c.l.b16 %v167
    %v282 = vunpack.c.h.b16 %v167
    %v283 = vunpack.c.l.b16 %v168
    %v284 = vunpack.c.h.b16 %v168
    %v285 = vunpack.c.l.b16 %v169
    %v286 = vunpack.c.h.b16 %v169
    %v287 = vunpack.c.l.b16 %v170
    %v288 = vunpack.c.h.b16 %v170
    %v289 = vpack.c.b16 %v229, %v225
    %v290 = vpack.c.b16 %v230, %v226
    %v291 = vpack.c.b16 %v231, %v227
    %v292 = vpack.c.b16 %v232, %v228
    %v293 = vpack.c.b16 %v237, %v233
    %v294 = vpack.c.b16 %v238, %v234
    %v295 = vpack.c.b16 %v239, %v235
    %v296 = vpack.c.b16 %v240, %v236
    %v297 = vpack.c.b16 %v245, %v241
    %v298 = vpack.c.b16 %v246, %v242
    %v299 = vpack.c.b16 %v247, %v243
    %v300 = vpack.c.b16 %v248, %v244
    %v301 = vpack.c.b16 %v253, %v249
    %v302 = vpack.c.b16 %v254, %v250
    %v303 = vpack.c.b16 %v255, %v251
    %v304 = vpack.c.b16 %v256, %v252
    %v305 = vpack.c.b16 %v261, %v257
    %v306 = vpack.c.b16 %v262, %v258
    %v307 = vpack.c.b16 %v263, %v259
    %v308 = vpack.c.b16 %v264, %v260
    %v309 = vpack.c.b16 %v269, %v265
    %v310 = vpack.c.b16 %v270, %v266
    %v311 = vpack.c.b16 %v271, %v267
    %v312 = vpack.c.b16 %v272, %v268
    %v313 = vpack.c.b16 %v277, %v273
    %v314 = vpack.c.b16 %v278, %v274
    %v315 = vpack.c.b16 %v279, %v275
    %v316 = vpack.c.b16 %v280, %v276
    %v317 = vpack.c.b16 %v285, %v281
    %v318 = vpack.c.b16 %v286, %v282
    %v319 = vpack.c.b16 %v287, %v283
    %v320 = vpack.c.b16 %v288, %v284
    %353 = vmatprep.subr.bf16.mxu0 %v290
    %354 = vmatpush1.bf16.msra.mxu0 %v289
    %355 = vmatprep.subr.bf16.mxu0 %v294
    %356 = vmatpush1.bf16.msra.mxu0 %v293
    %357 = vmatprep.subr.bf16.mxu0 %v298
    %358 = vmatpush1.bf16.msra.mxu0 %v297
    %359 = vmatprep.subr.bf16.mxu0 %v302
    %360 = vmatpush1.bf16.msra.mxu0 %v301
    %361 = vmatprep.subr.bf16.mxu0 %v306
    %362 = vmatpush1.bf16.msra.mxu0 %v305
    %363 = vmatprep.subr.bf16.mxu0 %v310
    %364 = vmatpush1.bf16.msra.mxu0 %v309
    %365 = vmatprep.subr.bf16.mxu0 %v314
    %366 = vmatpush1.bf16.msra.mxu0 %v313
    %367 = vmatprep.subr.bf16.mxu0 %v318
    %368 = vmatpush1.bf16.msra.mxu0 %v317
    %369 = vmatprep.subr.bf16.mxu0 0
    %370 = vmatpush1.bf16.msra.mxu0 0
    %371 = vmatprep.subr.bf16.mxu0 0
    %372 = vmatpush1.bf16.msra.mxu0 0
    %373 = vmatprep.subr.bf16.mxu0 0
    %374 = vmatpush1.bf16.msra.mxu0 0
    %375 = vmatprep.subr.bf16.mxu0 0
    %376 = vmatpush1.bf16.msra.mxu0 0
    %377 = vmatprep.subr.bf16.mxu0 0
    %378 = vmatpush1.bf16.msra.mxu0 0
    %379 = vmatprep.subr.bf16.mxu0 0
    %380 = vmatpush1.bf16.msra.mxu0 0
    %381 = vmatprep.subr.bf16.mxu0 0
    %382 = vmatpush1.bf16.msra.mxu0 0
    %383 = vmatprep.subr.bf16.mxu0 0
    %384 = vmatpush1.bf16.msra.mxu0 0
    %385 = vmatprep.mubr.bf16.mxu0 0
    %386 = vmatmul.mubr.bf16.gmra.mrb[0].mxu0 %v138
    %v387 = vpop.f32.mrb[0].mxu0
    %v388 = vadd.f32 %v176, %v387
    %v389 = vpop.f32.mrb[0].mxu0
    %v390 = vadd.f32 %v180, %v389
    %v391 = vpop.f32.mrb[0].mxu0
    %v392 = vpop.f32.mrb[0].mxu0
    %393 = vdwg.mxu0
    %394 = vmatprep.subr.bf16.mxu0 %v292
    %395 = vmatpush1.bf16.msra.mxu0 %v291
    %396 = vmatprep.subr.bf16.mxu0 %v296
    %397 = vmatpush1.bf16.msra.mxu0 %v295
    %398 = vmatprep.subr.bf16.mxu0 %v300
    %399 = vmatpush1.bf16.msra.mxu0 %v299
    %400 = vmatprep.subr.bf16.mxu0 %v304
    %401 = vmatpush1.bf16.msra.mxu0 %v303
    %402 = vmatprep.subr.bf16.mxu0 %v308
    %403 = vmatpush1.bf16.msra.mxu0 %v307
    %404 = vmatprep.subr.bf16.mxu0 %v312
    %405 = vmatpush1.bf16.msra.mxu0 %v311
    %406 = vmatprep.subr.bf16.mxu0 %v316
    %407 = vmatpush1.bf16.msra.mxu0 %v315
    %408 = vmatprep.subr.bf16.mxu0 %v320
    %409 = vmatpush1.bf16.msra.mxu0 %v319
    %410 = vmatprep.subr.bf16.mxu0 0
    %411 = vmatpush1.bf16.msra.mxu0 0
    %412 = vmatprep.subr.bf16.mxu0 0
    %413 = vmatpush1.bf16.msra.mxu0 0
    %414 = vmatprep.subr.bf16.mxu0 0
    %415 = vmatpush1.bf16.msra.mxu0 0
    %416 = vmatprep.subr.bf16.mxu0 0
    %417 = vmatpush1.bf16.msra.mxu0 0
    %418 = vmatprep.subr.bf16.mxu0 0
    %419 = vmatpush1.bf16.msra.mxu0 0
    %420 = vmatprep.subr.bf16.mxu0 0
    %421 = vmatpush1.bf16.msra.mxu0 0
    %422 = vmatprep.subr.bf16.mxu0 0
    %423 = vmatpush1.bf16.msra.mxu0 0
    %424 = vmatprep.subr.bf16.mxu0 0
    %425 = vmatpush1.bf16.msra.mxu0 0
    %426 = vmatprep.mubr.bf16.mxu0 0
    %427 = vmatmul.mubr.bf16.gmra.mrb[0].mxu0 %v138
    %v428 = vpop.f32.mrb[0].mxu0
    %v429 = vadd.f32 %v184, %v428
    %v430 = vpop.f32.mrb[0].mxu0
    %v431 = vadd.f32 %v188, %v430
    %v432 = vpop.f32.mrb[0].mxu0
    %v433 = vpop.f32.mrb[0].mxu0
    %434 = vdwg.mxu0
    %v435 = vmax.f32 %v388, 0.0
    %v436 = vmax.f32 %v390, 0.0
    %v437 = vmax.f32 %v429, 0.0
    %v438 = vmax.f32 %v431, 0.0
    %v439 = vpack.c.bf16 %v435, %v435
    %v440 = vpack.c.bf16 %v436, %v436
    %v441 = vpack.c.bf16 %v437, %v437
    %v442 = vpack.c.bf16 %v438, %v438
    %v443 = vld [vmem:[#allocation7] sm:$0xf]
    %v444 = vld [vmem:[#allocation7 + $0x4] sm:$0xf]
    %v445 = vld [vmem:[#allocation7 + $0x8] sm:$0xf]
    %v446 = vld [vmem:[#allocation7 + $0xc] sm:$0xf]
    %v447 = vld [vmem:[#allocation7 + $0x10] sm:$0xf]
    %v448 = vld [vmem:[#allocation7 + $0x14] sm:$0xf]
    %v449 = vld [vmem:[#allocation7 + $0x18] sm:$0xf]
    %v450 = vld [vmem:[#allocation7 + $0x1c] sm:$0xf]
    %v451 = vld [vmem:[#allocation7 + $0x20] sm:$0xf]
    %v452 = vld [vmem:[#allocation7 + $0x24] sm:$0xf]
    %v453 = vld [vmem:[#allocation7 + $0x28] sm:$0xf]
    %v454 = vld [vmem:[#allocation7 + $0x2c] sm:$0xf]
    %v455 = vld [vmem:[#allocation7 + $0x30] sm:$0xf]
    %v456 = vld [vmem:[#allocation7 + $0x34] sm:$0xf]
    %v457 = vld [vmem:[#allocation7 + $0x38] sm:$0xf]
    %v458 = vld [vmem:[#allocation7 + $0x3c] sm:$0xf]
    %v459 = vld [vmem:[#allocation7 + $0x40] sm:$0xf]
    %v460 = vld [vmem:[#allocation7 + $0x44] sm:$0xf]
    %v461 = vld [vmem:[#allocation7 + $0x48] sm:$0xf]
    %v462 = vld [vmem:[#allocation7 + $0x4c] sm:$0xf]
    %v463 = vld [vmem:[#allocation7 + $0x50] sm:$0xf]
    %v464 = vld [vmem:[#allocation7 + $0x54] sm:$0xf]
    %v465 = vld [vmem:[#allocation7 + $0x58] sm:$0xf]
    %v466 = vld [vmem:[#allocation7 + $0x5c] sm:$0xf]
    %v467 = vld [vmem:[#allocation7 + $0x60] sm:$0xf]
    %v468 = vld [vmem:[#allocation7 + $0x64] sm:$0xf]
    %v469 = vld [vmem:[#allocation7 + $0x68] sm:$0xf]
    %v470 = vld [vmem:[#allocation7 + $0x6c] sm:$0xf]
    %v471 = vld [vmem:[#allocation7 + $0x70] sm:$0xf]
    %v472 = vld [vmem:[#allocation7 + $0x74] sm:$0xf]
    %v473 = vld [vmem:[#allocation7 + $0x78] sm:$0xf]
    %v474 = vld [vmem:[#allocation7 + $0x7c] sm:$0xf]
    %v475 = vld [vmem:[#allocation7 + $0x80] sm:$0xf]
    %v476 = vld [vmem:[#allocation7 + $0x84] sm:$0xf]
    %v477 = vld [vmem:[#allocation7 + $0x88] sm:$0xf]
    %v478 = vld [vmem:[#allocation7 + $0x8c] sm:$0xf]
    %v479 = vld [vmem:[#allocation7 + $0x90] sm:$0xf]
    %v480 = vld [vmem:[#allocation7 + $0x94] sm:$0xf]
    %v481 = vld [vmem:[#allocation7 + $0x98] sm:$0xf]
    %v482 = vld [vmem:[#allocation7 + $0x9c] sm:$0xf]
    %v483 = vld [vmem:[#allocation7 + $0xa0] sm:$0xf]
    %v484 = vld [vmem:[#allocation7 + $0xa4] sm:$0xf]
    %v485 = vld [vmem:[#allocation7 + $0xa8] sm:$0xf]
    %v486 = vld [vmem:[#allocation7 + $0xac] sm:$0xf]
    %v487 = vld [vmem:[#allocation7 + $0xb0] sm:$0xf]
    %v488 = vld [vmem:[#allocation7 + $0xb4] sm:$0xf]
    %v489 = vld [vmem:[#allocation7 + $0xb8] sm:$0xf]
    %v490 = vld [vmem:[#allocation7 + $0xbc] sm:$0xf]
    %v491 = vld [vmem:[#allocation7 + $0xc0] sm:$0xf]
    %v492 = vld [vmem:[#allocation7 + $0xc4] sm:$0xf]
    %v493 = vld [vmem:[#allocation7 + $0xc8] sm:$0xf]
    %v494 = vld [vmem:[#allocation7 + $0xcc] sm:$0xf]
    %v495 = vld [vmem:[#allocation7 + $0xd0] sm:$0xf]
    %v496 = vld [vmem:[#allocation7 + $0xd4] sm:$0xf]
    %v497 = vld [vmem:[#allocation7 + $0xd8] sm:$0xf]
    %v498 = vld [vmem:[#allocation7 + $0xdc] sm:$0xf]
    %v499 = vld [vmem:[#allocation7 + $0xe0] sm:$0xf]
    %v500 = vld [vmem:[#allocation7 + $0xe4] sm:$0xf]
    %v501 = vld [vmem:[#allocation7 + $0xe8] sm:$0xf]
    %v502 = vld [vmem:[#allocation7 + $0xec] sm:$0xf]
    %v503 = vld [vmem:[#allocation7 + $0xf0] sm:$0xf]
    %v504 = vld [vmem:[#allocation7 + $0xf4] sm:$0xf]
    %v505 = vld [vmem:[#allocation7 + $0xf8] sm:$0xf]
    %v506 = vld [vmem:[#allocation7 + $0xfc] sm:$0xf]
    %v507 = vld [vmem:[%s6] sm:$0x1]
    %v509 = vlaneseq
    %v510 = vshrl.u32 %v509, 7
    %v511 = vsub.s32 0, %v510
    %v512 = vrot.slane %v507, %v511
    %v578 = vunpack.c.l.b16 %v443
    %v579 = vunpack.c.l.b16 %v444
    %v580 = vunpack.c.l.b16 %v445
    %v581 = vunpack.c.l.b16 %v446
    %v582 = vunpack.c.l.b16 %v447
    %v583 = vunpack.c.l.b16 %v448
    %v584 = vunpack.c.l.b16 %v449
    %v585 = vunpack.c.l.b16 %v450
    %v586 = vunpack.c.l.b16 %v451
    %v587 = vunpack.c.l.b16 %v452
    %v588 = vunpack.c.l.b16 %v453
    %v589 = vunpack.c.l.b16 %v454
    %v590 = vunpack.c.l.b16 %v455
    %v591 = vunpack.c.l.b16 %v456
    %v592 = vunpack.c.l.b16 %v457
    %v593 = vunpack.c.l.b16 %v458
    %v594 = vunpack.c.l.b16 %v459
    %v595 = vunpack.c.l.b16 %v460
    %v596 = vunpack.c.l.b16 %v461
    %v597 = vunpack.c.l.b16 %v462
    %v598 = vunpack.c.l.b16 %v463
    %v599 = vunpack.c.l.b16 %v464
    %v600 = vunpack.c.l.b16 %v465
    %v601 = vunpack.c.l.b16 %v466
    %v602 = vunpack.c.l.b16 %v467
    %v603 = vunpack.c.l.b16 %v468
    %v604 = vunpack.c.l.b16 %v469
    %v605 = vunpack.c.l.b16 %v470
    %v606 = vunpack.c.l.b16 %v471
    %v607 = vunpack.c.l.b16 %v472
    %v608 = vunpack.c.l.b16 %v473
    %v609 = vunpack.c.l.b16 %v474
    %v610 = vunpack.c.l.b16 %v475
    %v611 = vunpack.c.l.b16 %v476
    %v612 = vunpack.c.l.b16 %v477
    %v613 = vunpack.c.l.b16 %v478
    %v614 = vunpack.c.l.b16 %v479
    %v615 = vunpack.c.l.b16 %v480
    %v616 = vunpack.c.l.b16 %v481
    %v617 = vunpack.c.l.b16 %v482
    %v618 = vunpack.c.l.b16 %v483
    %v619 = vunpack.c.l.b16 %v484
    %v620 = vunpack.c.l.b16 %v485
    %v621 = vunpack.c.l.b16 %v486
    %v622 = vunpack.c.l.b16 %v487
    %v623 = vunpack.c.l.b16 %v488
    %v624 = vunpack.c.l.b16 %v489
    %v625 = vunpack.c.l.b16 %v490
    %v626 = vunpack.c.l.b16 %v491
    %v627 = vunpack.c.l.b16 %v492
    %v628 = vunpack.c.l.b16 %v493
    %v629 = vunpack.c.l.b16 %v494
    %v630 = vunpack.c.l.b16 %v495
    %v631 = vunpack.c.l.b16 %v496
    %v632 = vunpack.c.l.b16 %v497
    %v633 = vunpack.c.l.b16 %v498
    %v634 = vunpack.c.l.b16 %v499
    %v635 = vunpack.c.l.b16 %v500
    %v636 = vunpack.c.l.b16 %v501
    %v637 = vunpack.c.l.b16 %v502
    %v638 = vunpack.c.l.b16 %v503
    %v639 = vunpack.c.l.b16 %v504
    %v640 = vunpack.c.l.b16 %v505
    %v641 = vunpack.c.l.b16 %v506
    %v642 = vpack.c.b16 %v579, %v578
    %v643 = vpack.c.b16 %v581, %v580
    %v644 = vpack.c.b16 %v583, %v582
    %v645 = vpack.c.b16 %v585, %v584
    %v646 = vpack.c.b16 %v587, %v586
    %v647 = vpack.c.b16 %v589, %v588
    %v648 = vpack.c.b16 %v591, %v590
    %v649 = vpack.c.b16 %v593, %v592
    %v650 = vpack.c.b16 %v595, %v594
    %v651 = vpack.c.b16 %v597, %v596
    %v652 = vpack.c.b16 %v599, %v598
    %v653 = vpack.c.b16 %v601, %v600
    %v654 = vpack.c.b16 %v603, %v602
    %v655 = vpack.c.b16 %v605, %v604
    %v656 = vpack.c.b16 %v607, %v606
    %v657 = vpack.c.b16 %v609, %v608
    %v658 = vpack.c.b16 %v611, %v610
    %v659 = vpack.c.b16 %v613, %v612
    %v660 = vpack.c.b16 %v615, %v614
    %v661 = vpack.c.b16 %v617, %v616
    %v662 = vpack.c.b16 %v619, %v618
    %v663 = vpack.c.b16 %v621, %v620
    %v664 = vpack.c.b16 %v623, %v622
    %v665 = vpack.c.b16 %v625, %v624
    %v666 = vpack.c.b16 %v627, %v626
    %v667 = vpack.c.b16 %v629, %v628
    %v668 = vpack.c.b16 %v631, %v630
    %v669 = vpack.c.b16 %v633, %v632
    %v670 = vpack.c.b16 %v635, %v634
    %v671 = vpack.c.b16 %v637, %v636
    %v672 = vpack.c.b16 %v639, %v638
    %v673 = vpack.c.b16 %v641, %v640
    %706 = vmatprep.subr.bf16.mxu0 0
    %707 = vmatpush1.bf16.msra.mxu0 %v642
    %708 = vmatprep.subr.bf16.mxu0 0
    %709 = vmatpush1.bf16.msra.mxu0 %v643
    %710 = vmatprep.subr.bf16.mxu0 0
    %711 = vmatpush1.bf16.msra.mxu0 %v644
    %712 = vmatprep.subr.bf16.mxu0 0
    %713 = vmatpush1.bf16.msra.mxu0 %v645
    %714 = vmatprep.subr.bf16.mxu0 0
    %715 = vmatpush1.bf16.msra.mxu0 %v646
    %716 = vmatprep.subr.bf16.mxu0 0
    %717 = vmatpush1.bf16.msra.mxu0 %v647
    %718 = vmatprep.subr.bf16.mxu0 0
    %719 = vmatpush1.bf16.msra.mxu0 %v648
    %720 = vmatprep.subr.bf16.mxu0 0
    %721 = vmatpush1.bf16.msra.mxu0 %v649
    %722 = vmatprep.subr.bf16.mxu0 0
    %723 = vmatpush1.bf16.msra.mxu0 %v650
    %724 = vmatprep.subr.bf16.mxu0 0
    %725 = vmatpush1.bf16.msra.mxu0 %v651
    %726 = vmatprep.subr.bf16.mxu0 0
    %727 = vmatpush1.bf16.msra.mxu0 %v652
    %728 = vmatprep.subr.bf16.mxu0 0
    %729 = vmatpush1.bf16.msra.mxu0 %v653
    %730 = vmatprep.subr.bf16.mxu0 0
    %731 = vmatpush1.bf16.msra.mxu0 %v654
    %732 = vmatprep.subr.bf16.mxu0 0
    %733 = vmatpush1.bf16.msra.mxu0 %v655
    %734 = vmatprep.subr.bf16.mxu0 0
    %735 = vmatpush1.bf16.msra.mxu0 %v656
    %736 = vmatprep.subr.bf16.mxu0 0
    %737 = vmatpush1.bf16.msra.mxu0 %v657
    %738 = vmatprep.mubr.bf16.mxu0 %v440
    %739 = vmatmul.mubr.bf16.gmra.mrb[0].mxu0 %v439
    %v740 = vpop.f32.mrb[0].mxu0
    %v741 = vadd.f32 %v512, %v740
    %v742 = vpop.f32.mrb[0].mxu0
    %v743 = vpop.f32.mrb[0].mxu0
    %v744 = vpop.f32.mrb[0].mxu0
    %745 = vdwg.mxu0
    %746 = vmatprep.subr.bf16.mxu0 0
    %747 = vmatpush1.bf16.msra.mxu0 %v658
    %748 = vmatprep.subr.bf16.mxu0 0
    %749 = vmatpush1.bf16.msra.mxu0 %v659
    %750 = vmatprep.subr.bf16.mxu0 0
    %751 = vmatpush1.bf16.msra.mxu0 %v660
    %752 = vmatprep.subr.bf16.mxu0 0
    %753 = vmatpush1.bf16.msra.mxu0 %v661
    %754 = vmatprep.subr.bf16.mxu0 0
    %755 = vmatpush1.bf16.msra.mxu0 %v662
    %756 = vmatprep.subr.bf16.mxu0 0
    %757 = vmatpush1.bf16.msra.mxu0 %v663
    %758 = vmatprep.subr.bf16.mxu0 0
    %759 = vmatpush1.bf16.msra.mxu0 %v664
    %760 = vmatprep.subr.bf16.mxu0 0
    %761 = vmatpush1.bf16.msra.mxu0 %v665
    %762 = vmatprep.subr.bf16.mxu0 0
    %763 = vmatpush1.bf16.msra.mxu0 %v666
    %764 = vmatprep.subr.bf16.mxu0 0
    %765 = vmatpush1.bf16.msra.mxu0 %v667
    %766 = vmatprep.subr.bf16.mxu0 0
    %767 = vmatpush1.bf16.msra.mxu0 %v668
    %768 = vmatprep.subr.bf16.mxu0 0
    %769 = vmatpush1.bf16.msra.mxu0 %v669
    %770 = vmatprep.subr.bf16.mxu0 0
    %771 = vmatpush1.bf16.msra.mxu0 %v670
    %772 = vmatprep.subr.bf16.mxu0 0
    %773 = vmatpush1.bf16.msra.mxu0 %v671
    %774 = vmatprep.subr.bf16.mxu0 0
    %775 = vmatpush1.bf16.msra.mxu0 %v672
    %776 = vmatprep.subr.bf16.mxu0 0
    %777 = vmatpush1.bf16.msra.mxu0 %v673
    %778 = vmatprep.mubr.bf16.mxu0 %v442
    %779 = vmatmul.mubr.bf16.gmra.mrb[0].mxu0 %v441
    %v780 = vpop.f32.mrb[0].mxu0
    %v781 = vadd.f32 %v741, %v780
    %v782 = vpop.f32.mrb[0].mxu0
    %v783 = vpop.f32.mrb[0].mxu0
    %v784 = vpop.f32.mrb[0].mxu0
    %785 = vdwg.mxu0
    %786 = vst [vmem:[#allocation8] sm:$0xff] %v781
    // Predicated region
    $region42: #{decoder_forward.1} parent=1 // pred_check
      _
    $region43: #{decoder_forward.1} parent=1 // pred_check_branch
      %788 = sbr.rel (0) target = $region45
    $region44: #{decoder_forward.1} parent=1 // pred_region
      %s790 = ssub.s32 128, 128
      %791 = vsyncadd [#allocation4], %s790
      %s793 = sshll.u32 [#allocation8], 4
      %s794 = int_to_ptr.vmem [resolvable:$true] %s793
      %796 = dma.vmem_to_hbm [thread:$0]  %s794, 128, %s7, [#allocation4]
    $region45: #{decoder_forward.1} parent=1 // pred_fallthru
      _
    // Predicated region
    $region46: #{decoder_forward.1} parent=1 // pred_check
      _
    $region47: #{decoder_forward.1} parent=1 // pred_check_branch
      %798 = sbr.rel (0) target = $region49
    $region48: #{decoder_forward.1} parent=1 // pred_region
      %799 = dma.done [#allocation4], 128
    $region49: #{decoder_forward.1} parent=1 // pred_fallthru
      _
    %800 = vsyncpa [#allocation3], 1
    %801 = vsyncpa [#allocation6], 1
    %802 = vsyncpa [#allocation4], 1

</llo_original>
